<compile_context>
chip_gen: v5e
topology: v5e:2x2
jax: 0.10.0
libtpu: 0.0.40
codegen_flags: <defaults>
</compile_context>

<pallas_src>
import jax
import jax.numpy as jnp
from jax.experimental import pallas as pl
from jax.experimental.pallas import tpu as pltpu

# ----- small, module-consistent config -----
B = 2            # batch
N = 8            # text sequence length
M = 8            # media (visual token) sequence length
DIM = 32         # language_dim == vision_dim
HEADS = 2        # num_heads
HEAD_DIM = 16    # head_dim
HALF = HEAD_DIM // 2
INNER = HEADS * HEAD_DIM    # 32
SCALE = HEAD_DIM ** (-0.5)
ROPE_BASE = 1.0e6


# ----------------------------- Pallas kernel ---------------------------------

def cross_attention_kernel(x_ref, m_ref,
                           wq_ref, wqp_ref, wk_ref, wkp_ref, wv_ref, wo_ref,
                           cq_ref, sq_ref, ck_ref, sk_ref,
                           o_ref, acc_ref):
    """One grid step = (one batch element, one head).

    Blocks (leading size-1 axis is the grid-selected batch/head index):
      x_ref  (1, N, DIM)        m_ref  (1, M, DIM)
      wq/wqp/wk/wkp/wv_ref (1, DIM, HEAD_DIM)      wo_ref (1, HEAD_DIM, DIM)
      cq/sq_ref (1, N, HEAD_DIM)  ck/sk_ref (1, M, HEAD_DIM)
      o_ref  (1, N, DIM)        acc_ref VMEM scratch (N, DIM) f32
    """
    h = pl.program_id(1)

    @pl.when(h == 0)
    def _():
        acc_ref[...] = jnp.zeros_like(acc_ref)

    # bf16 MXU operands, f32 accumulation; everything after the MXU stays f32.
    x = x_ref[0].astype(jnp.bfloat16)       # (N, DIM)
    m = m_ref[0].astype(jnp.bfloat16)       # (M, DIM)

    # RoPE: rotate_half folded into permuted/signed weight columns -> one extra
    # small matmul per tensor, zero in-kernel lane shuffles.
    q = (jnp.dot(x, wq_ref[0], preferred_element_type=jnp.float32) * cq_ref[0]
         + jnp.dot(x, wqp_ref[0], preferred_element_type=jnp.float32) * sq_ref[0])
    k = (jnp.dot(m, wk_ref[0], preferred_element_type=jnp.float32) * ck_ref[0]
         + jnp.dot(m, wkp_ref[0], preferred_element_type=jnp.float32) * sk_ref[0])
    v = jnp.dot(m, wv_ref[0], preferred_element_type=jnp.float32)       # (M, HD)

    # Attention for this (batch, head).  No batch mask needed: the grid already
    # isolates batches.  Full score matrix is fine at this media length; a
    # flash-style KV loop is the production path (see header TODO).
    s = jnp.einsum('nd,md->nm',
                   q.astype(jnp.bfloat16), k.astype(jnp.bfloat16),
                   preferred_element_type=jnp.float32) * SCALE           # (N, M)
    s = s - jnp.max(s, axis=-1, keepdims=True)
    p = jnp.exp(s)                                                       # f32
    inv_l = pl.reciprocal(jnp.sum(p, axis=-1, keepdims=True), approx=True)
    o = jnp.dot(p.astype(jnp.bfloat16), v.astype(jnp.bfloat16),
                preferred_element_type=jnp.float32) * inv_l              # (N, HD)

    # Fold to_out into the head axis: concat_h(o_h) @ Wo == sum_h o_h @ Wo[h].
    acc_ref[...] += jnp.dot(o.astype(jnp.bfloat16), wo_ref[0],
                            preferred_element_type=jnp.float32)

    @pl.when(h == pl.num_programs(1) - 1)
    def _():
        # TODO(synk): at production, pad DIM to a multiple of 128 so this store
        # is an unmasked lane-dense vst instead of a masked partial store.
        o_ref[0] = acc_ref[...].astype(o_ref.dtype)


# ----------------------------- JAX glue --------------------------------------

def rope_cos_sin(position_ids, head_dim, base=ROPE_BASE):
    # position_ids: (B, S) int32  ->  cos, sin: (B, S, head_dim) f32
    inv_freq = 1.0 / (base ** (jnp.arange(0, head_dim, 2, dtype=jnp.float32) / head_dim))
    freqs = position_ids.astype(jnp.float32)[..., None] * inv_freq[None, None, :]
    emb = jnp.concatenate([freqs, freqs], axis=-1)
    return jnp.cos(emb), jnp.sin(emb)


@jax.jit
def cross_attention(params, x, media, text_pos_ids, media_pos_ids):
    b, n, d = x.shape
    _, m, _ = media.shape

    cos_q, sin_q = rope_cos_sin(text_pos_ids, HEAD_DIM)     # (B, N, HD)
    cos_k, sin_k = rope_cos_sin(media_pos_ids, HEAD_DIM)    # (B, M, HD)

    # to_kv produces [k | v] on the column axis (chunk(2, dim=-1)).
    wk, wv = jnp.split(params['w_kv'], 2, axis=-1)

    def per_head(w):            # (DIM, INNER) -> (HEADS, DIM, HEAD_DIM), bf16
        return jnp.transpose(w.reshape(d, HEADS, HEAD_DIM), (1, 0, 2)).astype(jnp.bfloat16)

    def rope_perm(w_h):         # x @ rope_perm(W) == rotate_half(x @ W)
        return jnp.concatenate([-w_h[..., HALF:], w_h[..., :HALF]], axis=-1)

    wq_h = per_head(params['wq'])
    wk_h = per_head(wk)
    wv_h = per_head(wv)
    wq_p = rope_perm(wq_h)
    wk_p = rope_perm(wk_h)
    wo_h = params['wo'].reshape(HEADS, HEAD_DIM, d).astype(jnp.bfloat16)

    batch_x = pl.BlockSpec((1, n, d), lambda bi, hi: (bi, 0, 0))
    batch_m = pl.BlockSpec((1, m, d), lambda bi, hi: (bi, 0, 0))
    head_w_in = pl.BlockSpec((1, d, HEAD_DIM), lambda bi, hi: (hi, 0, 0))
    head_w_out = pl.BlockSpec((1, HEAD_DIM, d), lambda bi, hi: (hi, 0, 0))
    rope_q = pl.BlockSpec((1, n, HEAD_DIM), lambda bi, hi: (bi, 0, 0))
    rope_k = pl.BlockSpec((1, m, HEAD_DIM), lambda bi, hi: (bi, 0, 0))
    out_spec = pl.BlockSpec((1, n, d), lambda bi, hi: (bi, 0, 0))

    out = pl.pallas_call(
        cross_attention_kernel,
        out_shape=jax.ShapeDtypeStruct((b, n, d), x.dtype),
        grid_spec=pltpu.PrefetchScalarGridSpec(
            num_scalar_prefetch=0,
            grid=(b, HEADS),                        # heads = reduction axis, last
            in_specs=[batch_x, batch_m,
                      head_w_in, head_w_in, head_w_in, head_w_in, head_w_in,
                      head_w_out,
                      rope_q, rope_q, rope_k, rope_k],
            out_specs=out_spec,
            scratch_shapes=[pltpu.VMEM((n, d), jnp.float32)]),
        compiler_params=pltpu.CompilerParams(
            dimension_semantics=("parallel", "arbitrary")),
    )(x, media, wq_h, wq_p, wk_h, wk_p, wv_h, wo_h,
      cos_q, sin_q, cos_k, sin_k)
    return out


# ----------------------------- pure-JAX reference ----------------------------

def _rotate_half(t):
    half = t.shape[-1] // 2
    return jnp.concatenate([-t[..., half:], t[..., :half]], axis=-1)


def reference_forward(params, x, media, text_pos_ids, media_pos_ids):
    q = x @ params['wq']
    k, v = jnp.split(media @ params['w_kv'], 2, axis=-1)

    def split_heads(t):
        b, s, _ = t.shape
        return jnp.transpose(t.reshape(b, s, HEADS, HEAD_DIM), (0, 2, 1, 3))

    q, k, v = split_heads(q), split_heads(k), split_heads(v)
    cos_q, sin_q = rope_cos_sin(text_pos_ids, HEAD_DIM)
    cos_k, sin_k = rope_cos_sin(media_pos_ids, HEAD_DIM)
    q = q * cos_q[:, None] + _rotate_half(q) * sin_q[:, None]
    k = k * cos_k[:, None] + _rotate_half(k) * sin_k[:, None]
    s = jnp.einsum('bhnd,bhmd->bhnm', q, k) * SCALE
    p = jax.nn.softmax(s, axis=-1)
    o = jnp.einsum('bhnm,bhmd->bhnd', p, v)
    o = jnp.transpose(o, (0, 2, 1, 3)).reshape(x.shape[0], x.shape[1], INNER)
    return o @ params['wo']


# ----------------------------- main -------------------------------------------

if __name__ == "__main__":
    key = jax.random.PRNGKey(0)
    ks = list(jax.random.split(key, 6))
    scale = 0.05

    params = {
        'wq':   jax.random.normal(ks[0], (DIM, INNER), jnp.float32) * scale,
        'w_kv': jax.random.normal(ks[1], (DIM, 2 * INNER), jnp.float32) * scale,
        'wo':   jax.random.normal(ks[2], (INNER, DIM), jnp.float32) * scale,
    }

    x = jax.random.normal(ks[3], (B, N, DIM), jnp.float32)
    media = jax.random.normal(ks[4], (B, M, DIM), jnp.float32)
    text_pos_ids = jnp.broadcast_to(jnp.arange(N, dtype=jnp.int32)[None, :], (B, N))
    media_pos_ids = jnp.broadcast_to(jnp.arange(M, dtype=jnp.int32)[None, :], (B, M))

    out = cross_attention(params, x, media, text_pos_ids, media_pos_ids)
    out = jax.block_until_ready(out)

    ref = reference_forward(params, x, media, text_pos_ids, media_pos_ids)
    assert out.shape == (B, N, DIM)
    # bf16 MXU operands + approx softmax reciprocal -> ~1e-3-level abs error.
    assert jnp.max(jnp.abs(out - ref)) < 1e-2, "mismatch vs pure-JAX reference"

    # TODO(synk): flash_attn_varlen (cu_seqlens) packed path, use_cached_media
    # stateful position-id bookkeeping, text_time masking and an externally-set
    # media_attn_mask are non-default branches and are not implemented.
    print("KERNEL_OK")
</pallas_src>

<mosaic_0001>
module attributes {stable_mosaic.version = 11 : i64} {
  func.func @cross_attention_kernel(%arg0: i32, %arg1: i32, %arg2: memref<1x8x32xf32, #tpu.memory_space<vmem>>, %arg3: memref<1x8x32xf32, #tpu.memory_space<vmem>>, %arg4: memref<1x32x16xbf16, #tpu.memory_space<vmem>>, %arg5: memref<1x32x16xbf16, #tpu.memory_space<vmem>>, %arg6: memref<1x32x16xbf16, #tpu.memory_space<vmem>>, %arg7: memref<1x32x16xbf16, #tpu.memory_space<vmem>>, %arg8: memref<1x32x16xbf16, #tpu.memory_space<vmem>>, %arg9: memref<1x16x32xbf16, #tpu.memory_space<vmem>>, %arg10: memref<1x8x16xf32, #tpu.memory_space<vmem>>, %arg11: memref<1x8x16xf32, #tpu.memory_space<vmem>>, %arg12: memref<1x8x16xf32, #tpu.memory_space<vmem>>, %arg13: memref<1x8x16xf32, #tpu.memory_space<vmem>>, %arg14: memref<1x8x32xf32, #tpu.memory_space<vmem>>, %arg15: memref<8x32xf32, #tpu.memory_space<vmem>>) attributes {dimension_semantics = [#tpu.dimension_semantics<parallel>, #tpu.dimension_semantics<arbitrary>], iteration_bounds = array<i64: 2, 2>, scalar_prefetch = 0 : i64, scratch_operands = 1 : i64, tpu.core_type = #tpu.core_type<tc>, window_params = [{transform_indices = @transform_0, window_bounds = array<i64: 1, 8, 32>}, {transform_indices = @transform_1, window_bounds = array<i64: 1, 8, 32>}, {transform_indices = @transform_2, window_bounds = array<i64: 1, 32, 16>}, {transform_indices = @transform_3, window_bounds = array<i64: 1, 32, 16>}, {transform_indices = @transform_4, window_bounds = array<i64: 1, 32, 16>}, {transform_indices = @transform_5, window_bounds = array<i64: 1, 32, 16>}, {transform_indices = @transform_6, window_bounds = array<i64: 1, 32, 16>}, {transform_indices = @transform_7, window_bounds = array<i64: 1, 16, 32>}, {transform_indices = @transform_8, window_bounds = array<i64: 1, 8, 16>}, {transform_indices = @transform_9, window_bounds = array<i64: 1, 8, 16>}, {transform_indices = @transform_10, window_bounds = array<i64: 1, 8, 16>}, {transform_indices = @transform_11, window_bounds = array<i64: 1, 8, 16>}, {transform_indices = @transform_12, window_bounds = array<i64: 1, 8, 32>}]} {
    %c0_i32 = arith.constant 0 : i32
    %0 = arith.cmpi eq, %arg1, %c0_i32 : i32
    %1 = arith.extui %0 : i1 to i32
    %c0_i32_0 = arith.constant 0 : i32
    %2 = arith.cmpi ne, %1, %c0_i32_0 : i32
    scf.if %2 {
      %cst_51 = arith.constant 0.000000e+00 : f32
      %66 = vector.broadcast %cst_51 : f32 to vector<8x32xf32>
      %c0_52 = arith.constant 0 : index
      %c0_53 = arith.constant 0 : index
      %67 = vector.load %arg15[%c0_52, %c0_53] : memref<8x32xf32, #tpu.memory_space<vmem>>, vector<8x32xf32>
      tpu.vector_store %arg15[%c0_52, %c0_53], %66 {strides = array<i32>} : memref<8x32xf32, #tpu.memory_space<vmem>>, vector<8x32xf32>,
    } else {
    }
    %c0 = arith.constant 0 : index
    %c0_1 = arith.constant 0 : index
    %c0_2 = arith.constant 0 : index
    %3 = vector.load %arg2[%c0, %c0_1, %c0_2] : memref<1x8x32xf32, #tpu.memory_space<vmem>>, vector<1x8x32xf32>
    %4 = vector.shape_cast %3 : vector<1x8x32xf32> to vector<8x32xf32>
    %5 = arith.truncf %4 : vector<8x32xf32> to vector<8x32xbf16>
    %c0_3 = arith.constant 0 : index
    %c0_4 = arith.constant 0 : index
    %c0_5 = arith.constant 0 : index
    %6 = vector.load %arg3[%c0_3, %c0_4, %c0_5] : memref<1x8x32xf32, #tpu.memory_space<vmem>>, vector<1x8x32xf32>
    %7 = vector.shape_cast %6 : vector<1x8x32xf32> to vector<8x32xf32>
    %8 = arith.truncf %7 : vector<8x32xf32> to vector<8x32xbf16>
    %c0_6 = arith.constant 0 : index
    %c0_7 = arith.constant 0 : index
    %c0_8 = arith.constant 0 : index
    %9 = vector.load %arg4[%c0_6, %c0_7, %c0_8] : memref<1x32x16xbf16, #tpu.memory_space<vmem>>, vector<1x32x16xbf16>
    %10 = vector.shape_cast %9 : vector<1x32x16xbf16> to vector<32x16xbf16>
    %cst = arith.constant dense<0.000000e+00> : vector<8x16xf32>
    %11 = tpu.matmul %5, %10, %cst {dimension_numbers = #tpu.dot_dimension_numbers<[1], [0], [0], [1], [0, 0, 1, 1], [], []>} : vector<8x32xbf16>, vector<32x16xbf16>, vector<8x16xf32> -> vector<8x16xf32>
    %c0_9 = arith.constant 0 : index
    %c0_10 = arith.constant 0 : index
    %c0_11 = arith.constant 0 : index
    %12 = vector.load %arg10[%c0_9, %c0_10, %c0_11] : memref<1x8x16xf32, #tpu.memory_space<vmem>>, vector<1x8x16xf32>
    %13 = vector.shape_cast %12 : vector<1x8x16xf32> to vector<8x16xf32>
    %14 = arith.mulf %11, %13 : vector<8x16xf32>
    %c0_12 = arith.constant 0 : index
    %c0_13 = arith.constant 0 : index
    %c0_14 = arith.constant 0 : index
    %15 = vector.load %arg5[%c0_12, %c0_13, %c0_14] : memref<1x32x16xbf16, #tpu.memory_space<vmem>>, vector<1x32x16xbf16>
    %16 = vector.shape_cast %15 : vector<1x32x16xbf16> to vector<32x16xbf16>
    %cst_15 = arith.constant dense<0.000000e+00> : vector<8x16xf32>
    %17 = tpu.matmul %5, %16, %cst_15 {dimension_numbers = #tpu.dot_dimension_numbers<[1], [0], [0], [1], [0, 0, 1, 1], [], []>} : vector<8x32xbf16>, vector<32x16xbf16>, vector<8x16xf32> -> vector<8x16xf32>
    %c0_16 = arith.constant 0 : index
    %c0_17 = arith.constant 0 : index
    %c0_18 = arith.constant 0 : index
    %18 = vector.load %arg11[%c0_16, %c0_17, %c0_18] : memref<1x8x16xf32, #tpu.memory_space<vmem>>, vector<1x8x16xf32>
    %19 = vector.shape_cast %18 : vector<1x8x16xf32> to vector<8x16xf32>
    %20 = arith.mulf %17, %19 : vector<8x16xf32>
    %21 = arith.addf %14, %20 : vector<8x16xf32>
    %c0_19 = arith.constant 0 : index
    %c0_20 = arith.constant 0 : index
    %c0_21 = arith.constant 0 : index
    %22 = vector.load %arg6[%c0_19, %c0_20, %c0_21] : memref<1x32x16xbf16, #tpu.memory_space<vmem>>, vector<1x32x16xbf16>
    %23 = vector.shape_cast %22 : vector<1x32x16xbf16> to vector<32x16xbf16>
    %cst_22 = arith.constant dense<0.000000e+00> : vector<8x16xf32>
    %24 = tpu.matmul %8, %23, %cst_22 {dimension_numbers = #tpu.dot_dimension_numbers<[1], [0], [0], [1], [0, 0, 1, 1], [], []>} : vector<8x32xbf16>, vector<32x16xbf16>, vector<8x16xf32> -> vector<8x16xf32>
    %c0_23 = arith.constant 0 : index
    %c0_24 = arith.constant 0 : index
    %c0_25 = arith.constant 0 : index
    %25 = vector.load %arg12[%c0_23, %c0_24, %c0_25] : memref<1x8x16xf32, #tpu.memory_space<vmem>>, vector<1x8x16xf32>
    %26 = vector.shape_cast %25 : vector<1x8x16xf32> to vector<8x16xf32>
    %27 = arith.mulf %24, %26 : vector<8x16xf32>
    %c0_26 = arith.constant 0 : index
    %c0_27 = arith.constant 0 : index
    %c0_28 = arith.constant 0 : index
    %28 = vector.load %arg7[%c0_26, %c0_27, %c0_28] : memref<1x32x16xbf16, #tpu.memory_space<vmem>>, vector<1x32x16xbf16>
    %29 = vector.shape_cast %28 : vector<1x32x16xbf16> to vector<32x16xbf16>
    %cst_29 = arith.constant dense<0.000000e+00> : vector<8x16xf32>
    %30 = tpu.matmul %8, %29, %cst_29 {dimension_numbers = #tpu.dot_dimension_numbers<[1], [0], [0], [1], [0, 0, 1, 1], [], []>} : vector<8x32xbf16>, vector<32x16xbf16>, vector<8x16xf32> -> vector<8x16xf32>
    %c0_30 = arith.constant 0 : index
    %c0_31 = arith.constant 0 : index
    %c0_32 = arith.constant 0 : index
    %31 = vector.load %arg13[%c0_30, %c0_31, %c0_32] : memref<1x8x16xf32, #tpu.memory_space<vmem>>, vector<1x8x16xf32>
    %32 = vector.shape_cast %31 : vector<1x8x16xf32> to vector<8x16xf32>
    %33 = arith.mulf %30, %32 : vector<8x16xf32>
    %34 = arith.addf %27, %33 : vector<8x16xf32>
    %c0_33 = arith.constant 0 : index
    %c0_34 = arith.constant 0 : index
    %c0_35 = arith.constant 0 : index
    %35 = vector.load %arg8[%c0_33, %c0_34, %c0_35] : memref<1x32x16xbf16, #tpu.memory_space<vmem>>, vector<1x32x16xbf16>
    %36 = vector.shape_cast %35 : vector<1x32x16xbf16> to vector<32x16xbf16>
    %cst_36 = arith.constant dense<0.000000e+00> : vector<8x16xf32>
    %37 = tpu.matmul %8, %36, %cst_36 {dimension_numbers = #tpu.dot_dimension_numbers<[1], [0], [0], [1], [0, 0, 1, 1], [], []>} : vector<8x32xbf16>, vector<32x16xbf16>, vector<8x16xf32> -> vector<8x16xf32>
    %38 = arith.truncf %21 : vector<8x16xf32> to vector<8x16xbf16>
    %39 = arith.truncf %34 : vector<8x16xf32> to vector<8x16xbf16>
    "tpu.trace_start"() <{level = 10 : i32, message = "nd,md->nm"}> : () -> ()
    %cst_37 = arith.constant dense<0.000000e+00> : vector<8x8xf32>
    %40 = tpu.matmul %38, %39, %cst_37 {dimension_numbers = #tpu.dot_dimension_numbers<[1], [1], [0], [0], [0, 0, 1, 0], [], []>} : vector<8x16xbf16>, vector<8x16xbf16>, vector<8x8xf32> -> vector<8x8xf32>
    "tpu.trace_stop"() : () -> ()
    %cst_38 = arith.constant 2.500000e-01 : f32
    %41 = vector.broadcast %cst_38 : f32 to vector<8x8xf32>
    %42 = arith.mulf %40, %41 : vector<8x8xf32>
    %cst_39 = arith.constant dense<0xFF800000> : vector<8xf32>
    %43 = vector.multi_reduction <maximumf>, %42, %cst_39 [1] : vector<8x8xf32> to vector<8xf32>
    %44 = vector.shape_cast %43 : vector<8xf32> to vector<8x1xf32>
    %45 = vector.broadcast %44 : vector<8x1xf32> to vector<8x8xf32>
    %46 = arith.subf %42, %45 : vector<8x8xf32>
    %47 = math.exp %46 : vector<8x8xf32>
    %cst_40 = arith.constant dense<0.000000e+00> : vector<8xf32>
    %48 = vector.multi_reduction <add>, %47, %cst_40 [1] : vector<8x8xf32> to vector<8xf32>
    %49 = vector.shape_cast %48 : vector<8xf32> to vector<8x1xf32>
    %50 = tpu.reciprocal %49 {approx = true} : vector<8x1xf32> -> vector<8x1xf32>
    %51 = arith.truncf %47 : vector<8x8xf32> to vector<8x8xbf16>
    %52 = arith.truncf %37 : vector<8x16xf32> to vector<8x16xbf16>
    %cst_41 = arith.constant dense<0.000000e+00> : vector<8x16xf32>
    %53 = tpu.matmul %51, %52, %cst_41 {dimension_numbers = #tpu.dot_dimension_numbers<[1], [0], [0], [1], [0, 0, 1, 1], [], []>} : vector<8x8xbf16>, vector<8x16xbf16>, vector<8x16xf32> -> vector<8x16xf32>
    %54 = vector.broadcast %50 : vector<8x1xf32> to vector<8x16xf32>
    %55 = arith.mulf %53, %54 : vector<8x16xf32>
    %c0_42 = arith.constant 0 : index
    %c0_43 = arith.constant 0 : index
    %56 = vector.load %arg15[%c0_42, %c0_43] : memref<8x32xf32, #tpu.memory_space<vmem>>, vector<8x32xf32>
    %57 = arith.truncf %55 : vector<8x16xf32> to vector<8x16xbf16>
    %c0_44 = arith.constant 0 : index
    %c0_45 = arith.constant 0 : index
    %c0_46 = arith.constant 0 : index
    %58 = vector.load %arg9[%c0_44, %c0_45, %c0_46] : memref<1x16x32xbf16, #tpu.memory_space<vmem>>, vector<1x16x32xbf16>
    %59 = vector.shape_cast %58 : vector<1x16x32xbf16> to vector<16x32xbf16>
    %cst_47 = arith.constant dense<0.000000e+00> : vector<8x32xf32>
    %60 = tpu.matmul %57, %59, %cst_47 {dimension_numbers = #tpu.dot_dimension_numbers<[1], [0], [0], [1], [0, 0, 1, 1], [], []>} : vector<8x16xbf16>, vector<16x32xbf16>, vector<8x32xf32> -> vector<8x32xf32>
    %61 = arith.addf %56, %60 : vector<8x32xf32>
    %c0_48 = arith.constant 0 : index
    %c0_49 = arith.constant 0 : index
    %62 = vector.load %arg15[%c0_48, %c0_49] : memref<8x32xf32, #tpu.memory_space<vmem>>, vector<8x32xf32>
    tpu.vector_store %arg15[%c0_48, %c0_49], %61 {strides = array<i32>} : memref<8x32xf32, #tpu.memory_space<vmem>>, vector<8x32xf32>,
    %c1_i32 = arith.constant 1 : i32
    %63 = arith.cmpi eq, %arg1, %c1_i32 : i32
    %64 = arith.extui %63 : i1 to i32
    %c0_i32_50 = arith.constant 0 : i32
    %65 = arith.cmpi ne, %64, %c0_i32_50 : i32
    scf.if %65 {
      %c0_51 = arith.constant 0 : index
      %c0_52 = arith.constant 0 : index
      %66 = vector.load %arg15[%c0_51, %c0_52] : memref<8x32xf32, #tpu.memory_space<vmem>>, vector<8x32xf32>
      %c0_53 = arith.constant 0 : index
      %c0_54 = arith.constant 0 : index
      %c0_55 = arith.constant 0 : index
      %67 = vector.load %arg14[%c0_53, %c0_54, %c0_55] : memref<1x8x32xf32, #tpu.memory_space<vmem>>, vector<1x8x32xf32>
      %68 = vector.shape_cast %67 : vector<1x8x32xf32> to vector<8x32xf32>
      %69 = vector.shape_cast %66 : vector<8x32xf32> to vector<1x8x32xf32>
      tpu.vector_store %arg14[%c0_53, %c0_54, %c0_55], %69 {strides = array<i32>} : memref<1x8x32xf32, #tpu.memory_space<vmem>>, vector<1x8x32xf32>,
    } else {
    }
    return
  }
  func.func @transform_0(%arg0: i32, %arg1: i32) -> (i32, i32, i32) {
    %c0_i32 = arith.constant 0 : i32
    %c0_i32_0 = arith.constant 0 : i32
    %c0_i32_1 = arith.constant 0 : i32
    return %arg0, %c0_i32, %c0_i32_0 : i32, i32, i32
  }
  func.func @transform_1(%arg0: i32, %arg1: i32) -> (i32, i32, i32) {
    %c0_i32 = arith.constant 0 : i32
    %c0_i32_0 = arith.constant 0 : i32
    %c0_i32_1 = arith.constant 0 : i32
    return %arg0, %c0_i32, %c0_i32_0 : i32, i32, i32
  }
  func.func @transform_2(%arg0: i32, %arg1: i32) -> (i32, i32, i32) {
    %c0_i32 = arith.constant 0 : i32
    %c0_i32_0 = arith.constant 0 : i32
    %c0_i32_1 = arith.constant 0 : i32
    return %arg1, %c0_i32, %c0_i32_0 : i32, i32, i32
  }
  func.func @transform_3(%arg0: i32, %arg1: i32) -> (i32, i32, i32) {
    %c0_i32 = arith.constant 0 : i32
    %c0_i32_0 = arith.constant 0 : i32
    %c0_i32_1 = arith.constant 0 : i32
    return %arg1, %c0_i32, %c0_i32_0 : i32, i32, i32
  }
  func.func @transform_4(%arg0: i32, %arg1: i32) -> (i32, i32, i32) {
    %c0_i32 = arith.constant 0 : i32
    %c0_i32_0 = arith.constant 0 : i32
    %c0_i32_1 = arith.constant 0 : i32
    return %arg1, %c0_i32, %c0_i32_0 : i32, i32, i32
  }
  func.func @transform_5(%arg0: i32, %arg1: i32) -> (i32, i32, i32) {
    %c0_i32 = arith.constant 0 : i32
    %c0_i32_0 = arith.constant 0 : i32
    %c0_i32_1 = arith.constant 0 : i32
    return %arg1, %c0_i32, %c0_i32_0 : i32, i32, i32
  }
  func.func @transform_6(%arg0: i32, %arg1: i32) -> (i32, i32, i32) {
    %c0_i32 = arith.constant 0 : i32
    %c0_i32_0 = arith.constant 0 : i32
    %c0_i32_1 = arith.constant 0 : i32
    return %arg1, %c0_i32, %c0_i32_0 : i32, i32, i32
  }
  func.func @transform_7(%arg0: i32, %arg1: i32) -> (i32, i32, i32) {
    %c0_i32 = arith.constant 0 : i32
    %c0_i32_0 = arith.constant 0 : i32
    %c0_i32_1 = arith.constant 0 : i32
    return %arg1, %c0_i32, %c0_i32_0 : i32, i32, i32
  }
  func.func @transform_8(%arg0: i32, %arg1: i32) -> (i32, i32, i32) {
    %c0_i32 = arith.constant 0 : i32
    %c0_i32_0 = arith.constant 0 : i32
    %c0_i32_1 = arith.constant 0 : i32
    return %arg0, %c0_i32, %c0_i32_0 : i32, i32, i32
  }
  func.func @transform_9(%arg0: i32, %arg1: i32) -> (i32, i32, i32) {
    %c0_i32 = arith.constant 0 : i32
    %c0_i32_0 = arith.constant 0 : i32
    %c0_i32_1 = arith.constant 0 : i32
    return %arg0, %c0_i32, %c0_i32_0 : i32, i32, i32
  }
  func.func @transform_10(%arg0: i32, %arg1: i32) -> (i32, i32, i32) {
    %c0_i32 = arith.constant 0 : i32
    %c0_i32_0 = arith.constant 0 : i32
    %c0_i32_1 = arith.constant 0 : i32
    return %arg0, %c0_i32, %c0_i32_0 : i32, i32, i32
  }
  func.func @transform_11(%arg0: i32, %arg1: i32) -> (i32, i32, i32) {
    %c0_i32 = arith.constant 0 : i32
    %c0_i32_0 = arith.constant 0 : i32
    %c0_i32_1 = arith.constant 0 : i32
    return %arg0, %c0_i32, %c0_i32_0 : i32, i32, i32
  }
  func.func @transform_12(%arg0: i32, %arg1: i32) -> (i32, i32, i32) {
    %c0_i32 = arith.constant 0 : i32
    %c0_i32_0 = arith.constant 0 : i32
    %c0_i32_1 = arith.constant 0 : i32
    return %arg0, %c0_i32, %c0_i32_0 : i32, i32, i32
  }
}

</mosaic_0001>

<llo_original>
// kernel: cross_attention.1
$region0: #{cross_attention.1}
  #allocation0 [shape = 'u32[]', space=smem, size = 0x4, offset = 0x4, fixed_abs, tag = 'smem constant byte address 0x4 - core index']
  #allocation1 [shape = 'u32[72,128]{1,0:T(1,128)}', space=vmem, size = 0x9000, scoped, tag = 'internal scratch']
  #allocation2 [shape = 'f32[8,32]{1,0:T(8,128)}', space=vmem, size = 0x1000, scoped, tag = 'scratch operand']
  %s0 = inlined_call_operand.vmem [shape: f32[2,8,32], index: 0, kind: input, shape index: {}]
  %s1 = inlined_call_operand.vmem [shape: f32[2,8,32], index: 1, kind: input, shape index: {}]
  %s2 = inlined_call_operand.vmem [shape: bf16[2,32,16], index: 2, kind: input, shape index: {}]
  %s3 = inlined_call_operand.vmem [shape: bf16[2,32,16], index: 3, kind: input, shape index: {}]
  %s4 = inlined_call_operand.vmem [shape: bf16[2,32,16], index: 4, kind: input, shape index: {}]
  %s5 = inlined_call_operand.vmem [shape: bf16[2,32,16], index: 5, kind: input, shape index: {}]
  %s6 = inlined_call_operand.vmem [shape: bf16[2,32,16], index: 6, kind: input, shape index: {}]
  %s7 = inlined_call_operand.vmem [shape: bf16[2,16,32], index: 7, kind: input, shape index: {}]
  %s8 = inlined_call_operand.vmem [shape: f32[2,8,16], index: 8, kind: input, shape index: {}]
  %s9 = inlined_call_operand.vmem [shape: f32[2,8,16], index: 9, kind: input, shape index: {}]
  %s10 = inlined_call_operand.vmem [shape: f32[2,8,16], index: 10, kind: input, shape index: {}]
  %s11 = inlined_call_operand.vmem [shape: f32[2,8,16], index: 11, kind: input, shape index: {}]
  %s12 = inlined_call_operand.hbm [shape: f32[2,8,32], index: 12, kind: output, shape index: {}]
  %s13 = sld [smem:[#allocation0]]
  $region89: #{cross_attention.1} parent=0
    _
  %s15 = ssub.s32 1, %s13
  %s16 = scalar_select 0, %s15, %s13
  $region1: #{cross_attention.1} parent=0
    #allocation3 [shape = 'u8[8192]{0}', space=vmem, size = 0x2000, scoped, tag = 'output window, operand 0']
    #allocation4 [shape = 's32[2]{0}', space=sflag, size = 0x8, scoped, tag = 'scoped memory for cross_attention.1']
    %17 = vsyncpa [#allocation4], 0
    %s18 = scalar_lea.sflag [#allocation4], 1
    %19 = vsyncpa %s18, 0
    loop: start=0, step=1, limit=6
    $region2: #{cross_attention.1} parent=1 // loop_pre_header
      _
    $region3: #{cross_attention.1} parent=1 // loop_header
      %s21 = sphi 0, %s25
      %p22 = scmp.ge.s32.totalorder %s21, 6
      %s28 = sphi 0, %s40
      %s29 = sphi 0, %s36
      %s30 = sphi 0, %s28
      %s31 = sphi 0, %s29
      %s32 = sphi 0, %s30
      %s33 = sphi 0, %s31
      %s43 = sphi 0, %s45
      %s46 = sphi 0, %s43
      %s47 = sphi 0, %s46
      %s63 = sphi 0, %s47
      %s69 = sphi 0, %s71
      %s72 = sphi 0, %s69
      %s73 = sphi 0, %s72
      %s89 = sphi 0, %s73
      %s95 = sphi 0, %s97
      %s98 = sphi 0, %s95
      %s99 = sphi 0, %s98
      %s115 = sphi 0, %s99
      %s121 = sphi 0, %s123
      %s124 = sphi 0, %s121
      %s125 = sphi 0, %s124
      %s141 = sphi 0, %s125
      %s147 = sphi 0, %s149
      %s150 = sphi 0, %s147
      %s151 = sphi 0, %s150
      %s167 = sphi 0, %s151
      %s173 = sphi 0, %s175
      %s176 = sphi 0, %s173
      %s177 = sphi 0, %s176
      %s193 = sphi 0, %s177
      %s199 = sphi 0, %s201
      %s202 = sphi 0, %s199
      %s203 = sphi 0, %s202
      %s219 = sphi 0, %s203
      %s225 = sphi 0, %s227
      %s228 = sphi 0, %s225
      %s229 = sphi 0, %s228
      %s245 = sphi 0, %s229
      %s251 = sphi 0, %s253
      %s254 = sphi 0, %s251
      %s255 = sphi 0, %s254
      %s271 = sphi 0, %s255
      %s277 = sphi 0, %s279
      %s280 = sphi 0, %s277
      %s281 = sphi 0, %s280
      %s297 = sphi 0, %s281
      %s303 = sphi 0, %s305
      %s306 = sphi 0, %s303
      %s307 = sphi 0, %s306
      %s323 = sphi 0, %s307
      %s329 = sphi 0, %s331
      %s332 = sphi 0, %s329
      %s333 = sphi 0, %s332
      %s349 = sphi 0, %s333
      %s355 = sphi 0, %s357
      %s358 = sphi 0, %s355
      %s359 = sphi 0, %s358
      %s375 = sphi 0, %s359
    $region4: #{cross_attention.1} parent=1 // loop_header_branch
      %24 = sbr.rel (%p22) target = $region8
    $region5: #{cross_attention.1} parent=1 // loop_body
      %s26 = ssub.s32 %s21, 1
      %s27 = ssub.s32 %s21, 2
      %s34 = sadd.s32 1, %s29
      %p35 = scmp.ge.s32.totalorder %s34, 2
      %s36 = scalar_select %p35, 0, %s34
      %s37 = sadd.s32 1, %s28
      %s38 = scalar_select %p35, %s37, %s28
      %p39 = scmp.ge.s32.totalorder %s38, 2
      %s40 = scalar_select %p39, 0, %s38
      %s41 = ssub.s32 %s28, %s40
      %p42 = scmp.eq.s32.totalorder %s41, 0
      %s44 = sadd.s32 %s43, 1
      %s45 = scalar_select %p42, %s43, %s44
      %p48 = pneg %p42
      %p49 = scmp.eq.s32.totalorder %s21, 3
      %p50 = por %p48, %p49
      %p51 = scmp.ne.s32.totalorder %s43, %s46
      %p52 = scmp.eq.s32.totalorder %s21, 0
      %p53 = por %p51, %p52
      %p54 = scmp.ne.s32.totalorder %s43, %s46
      %p55 = scmp.eq.s32.totalorder %s26, 3
      %p56 = por %p54, %p55
      %p57 = scmp.ne.s32.totalorder %s46, %s47
      %p58 = scmp.eq.s32.totalorder %s26, 0
      %p59 = por %p57, %p58
      %p60 = scmp.ne.s32.totalorder %s46, %s47
      %p61 = scmp.eq.s32.totalorder %s27, 3
      %p62 = por %p60, %p61
      %p64 = scmp.ne.s32.totalorder %s47, %s63
      %p65 = scmp.eq.s32.totalorder %s27, 0
      %p66 = por %p64, %p65
      %s67 = ssub.s32 %s28, %s40
      %p68 = scmp.eq.s32.totalorder %s67, 0
      %s70 = sadd.s32 %s69, 1
      %s71 = scalar_select %p68, %s69, %s70
      %p74 = pneg %p68
      %p75 = scmp.eq.s32.totalorder %s21, 3
      %p76 = por %p74, %p75
      %p77 = scmp.ne.s32.totalorder %s69, %s72
      %p78 = scmp.eq.s32.totalorder %s21, 0
      %p79 = por %p77, %p78
      %p80 = scmp.ne.s32.totalorder %s69, %s72
      %p81 = scmp.eq.s32.totalorder %s26, 3
      %p82 = por %p80, %p81
      %p83 = scmp.ne.s32.totalorder %s72, %s73
      %p84 = scmp.eq.s32.totalorder %s26, 0
      %p85 = por %p83, %p84
      %p86 = scmp.ne.s32.totalorder %s72, %s73
      %p87 = scmp.eq.s32.totalorder %s27, 3
      %p88 = por %p86, %p87
      %p90 = scmp.ne.s32.totalorder %s73, %s89
      %p91 = scmp.eq.s32.totalorder %s27, 0
      %p92 = por %p90, %p91
      %s93 = ssub.s32 %s29, %s36
      %p94 = scmp.eq.s32.totalorder %s93, 0
      %s96 = sadd.s32 %s95, 1
      %s97 = scalar_select %p94, %s95, %s96
      %p100 = pneg %p94
      %p101 = scmp.eq.s32.totalorder %s21, 3
      %p102 = por %p100, %p101
      %p103 = scmp.ne.s32.totalorder %s95, %s98
      %p104 = scmp.eq.s32.totalorder %s21, 0
      %p105 = por %p103, %p104
      %p106 = scmp.ne.s32.totalorder %s95, %s98
      %p107 = scmp.eq.s32.totalorder %s26, 3
      %p108 = por %p106, %p107
      %p109 = scmp.ne.s32.totalorder %s98, %s99
      %p110 = scmp.eq.s32.totalorder %s26, 0
      %p111 = por %p109, %p110
      %p112 = scmp.ne.s32.totalorder %s98, %s99
      %p113 = scmp.eq.s32.totalorder %s27, 3
      %p114 = por %p112, %p113
      %p116 = scmp.ne.s32.totalorder %s99, %s115
      %p117 = scmp.eq.s32.totalorder %s27, 0
      %p118 = por %p116, %p117
      %s119 = ssub.s32 %s29, %s36
      %p120 = scmp.eq.s32.totalorder %s119, 0
      %s122 = sadd.s32 %s121, 1
      %s123 = scalar_select %p120, %s121, %s122
      %p126 = pneg %p120
      %p127 = scmp.eq.s32.totalorder %s21, 3
      %p128 = por %p126, %p127
      %p129 = scmp.ne.s32.totalorder %s121, %s124
      %p130 = scmp.eq.s32.totalorder %s21, 0
      %p131 = por %p129, %p130
      %p132 = scmp.ne.s32.totalorder %s121, %s124
      %p133 = scmp.eq.s32.totalorder %s26, 3
      %p134 = por %p132, %p133
      %p135 = scmp.ne.s32.totalorder %s124, %s125
      %p136 = scmp.eq.s32.totalorder %s26, 0
      %p137 = por %p135, %p136
      %p138 = scmp.ne.s32.totalorder %s124, %s125
      %p139 = scmp.eq.s32.totalorder %s27, 3
      %p140 = por %p138, %p139
      %p142 = scmp.ne.s32.totalorder %s125, %s141
      %p143 = scmp.eq.s32.totalorder %s27, 0
      %p144 = por %p142, %p143
      %s145 = ssub.s32 %s29, %s36
      %p146 = scmp.eq.s32.totalorder %s145, 0
      %s148 = sadd.s32 %s147, 1
      %s149 = scalar_select %p146, %s147, %s148
      %p152 = pneg %p146
      %p153 = scmp.eq.s32.totalorder %s21, 3
      %p154 = por %p152, %p153
      %p155 = scmp.ne.s32.totalorder %s147, %s150
      %p156 = scmp.eq.s32.totalorder %s21, 0
      %p157 = por %p155, %p156
      %p158 = scmp.ne.s32.totalorder %s147, %s150
      %p159 = scmp.eq.s32.totalorder %s26, 3
      %p160 = por %p158, %p159
      %p161 = scmp.ne.s32.totalorder %s150, %s151
      %p162 = scmp.eq.s32.totalorder %s26, 0
      %p163 = por %p161, %p162
      %p164 = scmp.ne.s32.totalorder %s150, %s151
      %p165 = scmp.eq.s32.totalorder %s27, 3
      %p166 = por %p164, %p165
      %p168 = scmp.ne.s32.totalorder %s151, %s167
      %p169 = scmp.eq.s32.totalorder %s27, 0
      %p170 = por %p168, %p169
      %s171 = ssub.s32 %s29, %s36
      %p172 = scmp.eq.s32.totalorder %s171, 0
      %s174 = sadd.s32 %s173, 1
      %s175 = scalar_select %p172, %s173, %s174
      %p178 = pneg %p172
      %p179 = scmp.eq.s32.totalorder %s21, 3
      %p180 = por %p178, %p179
      %p181 = scmp.ne.s32.totalorder %s173, %s176
      %p182 = scmp.eq.s32.totalorder %s21, 0
      %p183 = por %p181, %p182
      %p184 = scmp.ne.s32.totalorder %s173, %s176
      %p185 = scmp.eq.s32.totalorder %s26, 3
      %p186 = por %p184, %p185
      %p187 = scmp.ne.s32.totalorder %s176, %s177
      %p188 = scmp.eq.s32.totalorder %s26, 0
      %p189 = por %p187, %p188
      %p190 = scmp.ne.s32.totalorder %s176, %s177
      %p191 = scmp.eq.s32.totalorder %s27, 3
      %p192 = por %p190, %p191
      %p194 = scmp.ne.s32.totalorder %s177, %s193
      %p195 = scmp.eq.s32.totalorder %s27, 0
      %p196 = por %p194, %p195
      %s197 = ssub.s32 %s29, %s36
      %p198 = scmp.eq.s32.totalorder %s197, 0
      %s200 = sadd.s32 %s199, 1
      %s201 = scalar_select %p198, %s199, %s200
      %p204 = pneg %p198
      %p205 = scmp.eq.s32.totalorder %s21, 3
      %p206 = por %p204, %p205
      %p207 = scmp.ne.s32.totalorder %s199, %s202
      %p208 = scmp.eq.s32.totalorder %s21, 0
      %p209 = por %p207, %p208
      %p210 = scmp.ne.s32.totalorder %s199, %s202
      %p211 = scmp.eq.s32.totalorder %s26, 3
      %p212 = por %p210, %p211
      %p213 = scmp.ne.s32.totalorder %s202, %s203
      %p214 = scmp.eq.s32.totalorder %s26, 0
      %p215 = por %p213, %p214
      %p216 = scmp.ne.s32.totalorder %s202, %s203
      %p217 = scmp.eq.s32.totalorder %s27, 3
      %p218 = por %p216, %p217
      %p220 = scmp.ne.s32.totalorder %s203, %s219
      %p221 = scmp.eq.s32.totalorder %s27, 0
      %p222 = por %p220, %p221
      %s223 = ssub.s32 %s29, %s36
      %p224 = scmp.eq.s32.totalorder %s223, 0
      %s226 = sadd.s32 %s225, 1
      %s227 = scalar_select %p224, %s225, %s226
      %p230 = pneg %p224
      %p231 = scmp.eq.s32.totalorder %s21, 3
      %p232 = por %p230, %p231
      %p233 = scmp.ne.s32.totalorder %s225, %s228
      %p234 = scmp.eq.s32.totalorder %s21, 0
      %p235 = por %p233, %p234
      %p236 = scmp.ne.s32.totalorder %s225, %s228
      %p237 = scmp.eq.s32.totalorder %s26, 3
      %p238 = por %p236, %p237
      %p239 = scmp.ne.s32.totalorder %s228, %s229
      %p240 = scmp.eq.s32.totalorder %s26, 0
      %p241 = por %p239, %p240
      %p242 = scmp.ne.s32.totalorder %s228, %s229
      %p243 = scmp.eq.s32.totalorder %s27, 3
      %p244 = por %p242, %p243
      %p246 = scmp.ne.s32.totalorder %s229, %s245
      %p247 = scmp.eq.s32.totalorder %s27, 0
      %p248 = por %p246, %p247
      %s249 = ssub.s32 %s28, %s40
      %p250 = scmp.eq.s32.totalorder %s249, 0
      %s252 = sadd.s32 %s251, 1
      %s253 = scalar_select %p250, %s251, %s252
      %p256 = pneg %p250
      %p257 = scmp.eq.s32.totalorder %s21, 3
      %p258 = por %p256, %p257
      %p259 = scmp.ne.s32.totalorder %s251, %s254
      %p260 = scmp.eq.s32.totalorder %s21, 0
      %p261 = por %p259, %p260
      %p262 = scmp.ne.s32.totalorder %s251, %s254
      %p263 = scmp.eq.s32.totalorder %s26, 3
      %p264 = por %p262, %p263
      %p265 = scmp.ne.s32.totalorder %s254, %s255
      %p266 = scmp.eq.s32.totalorder %s26, 0
      %p267 = por %p265, %p266
      %p268 = scmp.ne.s32.totalorder %s254, %s255
      %p269 = scmp.eq.s32.totalorder %s27, 3
      %p270 = por %p268, %p269
      %p272 = scmp.ne.s32.totalorder %s255, %s271
      %p273 = scmp.eq.s32.totalorder %s27, 0
      %p274 = por %p272, %p273
      %s275 = ssub.s32 %s28, %s40
      %p276 = scmp.eq.s32.totalorder %s275, 0
      %s278 = sadd.s32 %s277, 1
      %s279 = scalar_select %p276, %s277, %s278
      %p282 = pneg %p276
      %p283 = scmp.eq.s32.totalorder %s21, 3
      %p284 = por %p282, %p283
      %p285 = scmp.ne.s32.totalorder %s277, %s280
      %p286 = scmp.eq.s32.totalorder %s21, 0
      %p287 = por %p285, %p286
      %p288 = scmp.ne.s32.totalorder %s277, %s280
      %p289 = scmp.eq.s32.totalorder %s26, 3
      %p290 = por %p288, %p289
      %p291 = scmp.ne.s32.totalorder %s280, %s281
      %p292 = scmp.eq.s32.totalorder %s26, 0
      %p293 = por %p291, %p292
      %p294 = scmp.ne.s32.totalorder %s280, %s281
      %p295 = scmp.eq.s32.totalorder %s27, 3
      %p296 = por %p294, %p295
      %p298 = scmp.ne.s32.totalorder %s281, %s297
      %p299 = scmp.eq.s32.totalorder %s27, 0
      %p300 = por %p298, %p299
      %s301 = ssub.s32 %s28, %s40
      %p302 = scmp.eq.s32.totalorder %s301, 0
      %s304 = sadd.s32 %s303, 1
      %s305 = scalar_select %p302, %s303, %s304
      %p308 = pneg %p302
      %p309 = scmp.eq.s32.totalorder %s21, 3
      %p310 = por %p308, %p309
      %p311 = scmp.ne.s32.totalorder %s303, %s306
      %p312 = scmp.eq.s32.totalorder %s21, 0
      %p313 = por %p311, %p312
      %p314 = scmp.ne.s32.totalorder %s303, %s306
      %p315 = scmp.eq.s32.totalorder %s26, 3
      %p316 = por %p314, %p315
      %p317 = scmp.ne.s32.totalorder %s306, %s307
      %p318 = scmp.eq.s32.totalorder %s26, 0
      %p319 = por %p317, %p318
      %p320 = scmp.ne.s32.totalorder %s306, %s307
      %p321 = scmp.eq.s32.totalorder %s27, 3
      %p322 = por %p320, %p321
      %p324 = scmp.ne.s32.totalorder %s307, %s323
      %p325 = scmp.eq.s32.totalorder %s27, 0
      %p326 = por %p324, %p325
      %s327 = ssub.s32 %s28, %s40
      %p328 = scmp.eq.s32.totalorder %s327, 0
      %s330 = sadd.s32 %s329, 1
      %s331 = scalar_select %p328, %s329, %s330
      %p334 = pneg %p328
      %p335 = scmp.eq.s32.totalorder %s21, 3
      %p336 = por %p334, %p335
      %p337 = scmp.ne.s32.totalorder %s329, %s332
      %p338 = scmp.eq.s32.totalorder %s21, 0
      %p339 = por %p337, %p338
      %p340 = scmp.ne.s32.totalorder %s329, %s332
      %p341 = scmp.eq.s32.totalorder %s26, 3
      %p342 = por %p340, %p341
      %p343 = scmp.ne.s32.totalorder %s332, %s333
      %p344 = scmp.eq.s32.totalorder %s26, 0
      %p345 = por %p343, %p344
      %p346 = scmp.ne.s32.totalorder %s332, %s333
      %p347 = scmp.eq.s32.totalorder %s27, 3
      %p348 = por %p346, %p347
      %p350 = scmp.ne.s32.totalorder %s333, %s349
      %p351 = scmp.eq.s32.totalorder %s27, 0
      %p352 = por %p350, %p351
      %s353 = ssub.s32 %s28, %s40
      %p354 = scmp.eq.s32.totalorder %s353, 0
      %s356 = sadd.s32 %s355, 1
      %s357 = scalar_select %p354, %s355, %s356
      %p360 = pneg %p354
      %p361 = scmp.eq.s32.totalorder %s21, 3
      %p362 = por %p360, %p361
      %p363 = scmp.ne.s32.totalorder %s355, %s358
      %p364 = scmp.eq.s32.totalorder %s21, 0
      %p365 = por %p363, %p364
      %p366 = scmp.ne.s32.totalorder %s355, %s358
      %p367 = scmp.eq.s32.totalorder %s26, 3
      %p368 = por %p366, %p367
      %p369 = scmp.ne.s32.totalorder %s358, %s359
      %p370 = scmp.eq.s32.totalorder %s26, 0
      %p371 = por %p369, %p370
      %p372 = scmp.ne.s32.totalorder %s358, %s359
      %p373 = scmp.eq.s32.totalorder %s27, 3
      %p374 = por %p372, %p373
      %p376 = scmp.ne.s32.totalorder %s359, %s375
      %p377 = scmp.eq.s32.totalorder %s27, 0
      %p378 = por %p376, %p377
      %p379 = scmp.le.s32.totalorder 1, %s21
      %p380 = scmp.lt.s32.totalorder %s21, 5
      %p381 = pnand %p379, %p380
      %p382 = pneg %p381
      // Predicated region
      $region9: #{cross_attention.1} parent=5 // pred_check
        _
      $region10: #{cross_attention.1} parent=5 // pred_check_branch
        %384 = sbr.rel (%p381) target = $region12
      $region11: #{cross_attention.1} parent=5 // pred_region
        %s385 = ssub.s32 %s21, 1
      $region12: #{cross_attention.1} parent=5 // pred_fallthru
        _
      %p386 = scmp.lt.s32.totalorder %s21, 4
      // Predicated region
      $region13: #{cross_attention.1} parent=5 // pred_check
        %p387 = pneg %p386
      $region14: #{cross_attention.1} parent=5 // pred_check_branch
        %389 = sbr.rel (%p387) target = $region16
      $region15: #{cross_attention.1} parent=5 // pred_region
        // Predicated region
        $region17: #{cross_attention.1} parent=15 // pred_check
          %p390 = pneg %p53
        $region18: #{cross_attention.1} parent=15 // pred_check_branch
          %392 = sbr.rel (%p390) target = $region20
        $region19: #{cross_attention.1} parent=15 // pred_region
          %p393 = scmp.lt.s32.totalorder %s28, 1
          %s394 = scalar_select %p393, %s28, 1
          %s395 = smul.addr %s394, 8
          %s396 = scalar_lea.vmem %s0, %s395
        $region20: #{cross_attention.1} parent=15 // pred_fallthru
          _
        // Predicated region
        $region21: #{cross_attention.1} parent=15 // pred_check
          %p397 = pneg %p79
        $region22: #{cross_attention.1} parent=15 // pred_check_branch
          %399 = sbr.rel (%p397) target = $region24
        $region23: #{cross_attention.1} parent=15 // pred_region
          %p400 = scmp.lt.s32.totalorder %s28, 1
          %s401 = scalar_select %p400, %s28, 1
          %s402 = smul.addr %s401, 8
          %s403 = scalar_lea.vmem %s1, %s402
        $region24: #{cross_attention.1} parent=15 // pred_fallthru
          _
        // Predicated region
        $region25: #{cross_attention.1} parent=15 // pred_check
          %p404 = pneg %p105
        $region26: #{cross_attention.1} parent=15 // pred_check_branch
          %406 = sbr.rel (%p404) target = $region28
        $region27: #{cross_attention.1} parent=15 // pred_region
          %p407 = scmp.lt.s32.totalorder %s29, 1
          %s408 = scalar_select %p407, %s29, 1
          %s409 = smul.addr %s408, 4
          %s410 = smul.addr %s409, 4
          %s411 = scalar_lea.vmem %s2, %s410
        $region28: #{cross_attention.1} parent=15 // pred_fallthru
          _
        // Predicated region
        $region29: #{cross_attention.1} parent=15 // pred_check
          %p412 = pneg %p131
        $region30: #{cross_attention.1} parent=15 // pred_check_branch
          %414 = sbr.rel (%p412) target = $region32
        $region31: #{cross_attention.1} parent=15 // pred_region
          %p415 = scmp.lt.s32.totalorder %s29, 1
          %s416 = scalar_select %p415, %s29, 1
          %s417 = smul.addr %s416, 4
          %s418 = smul.addr %s417, 4
          %s419 = scalar_lea.vmem %s3, %s418
        $region32: #{cross_attention.1} parent=15 // pred_fallthru
          _
        // Predicated region
        $region33: #{cross_attention.1} parent=15 // pred_check
          %p420 = pneg %p157
        $region34: #{cross_attention.1} parent=15 // pred_check_branch
          %422 = sbr.rel (%p420) target = $region36
        $region35: #{cross_attention.1} parent=15 // pred_region
          %p423 = scmp.lt.s32.totalorder %s29, 1
          %s424 = scalar_select %p423, %s29, 1
          %s425 = smul.addr %s424, 4
          %s426 = smul.addr %s425, 4
          %s427 = scalar_lea.vmem %s4, %s426
        $region36: #{cross_attention.1} parent=15 // pred_fallthru
          _
        // Predicated region
        $region37: #{cross_attention.1} parent=15 // pred_check
          %p428 = pneg %p183
        $region38: #{cross_attention.1} parent=15 // pred_check_branch
          %430 = sbr.rel (%p428) target = $region40
        $region39: #{cross_attention.1} parent=15 // pred_region
          %p431 = scmp.lt.s32.totalorder %s29, 1
          %s432 = scalar_select %p431, %s29, 1
          %s433 = smul.addr %s432, 4
          %s434 = smul.addr %s433, 4
          %s435 = scalar_lea.vmem %s5, %s434
        $region40: #{cross_attention.1} parent=15 // pred_fallthru
          _
        // Predicated region
        $region41: #{cross_attention.1} parent=15 // pred_check
          %p436 = pneg %p209
        $region42: #{cross_attention.1} parent=15 // pred_check_branch
          %438 = sbr.rel (%p436) target = $region44
        $region43: #{cross_attention.1} parent=15 // pred_region
          %p439 = scmp.lt.s32.totalorder %s29, 1
          %s440 = scalar_select %p439, %s29, 1
          %s441 = smul.addr %s440, 4
          %s442 = smul.addr %s441, 4
          %s443 = scalar_lea.vmem %s6, %s442
        $region44: #{cross_attention.1} parent=15 // pred_fallthru
          _
        // Predicated region
        $region45: #{cross_attention.1} parent=15 // pred_check
          %p444 = pneg %p235
        $region46: #{cross_attention.1} parent=15 // pred_check_branch
          %446 = sbr.rel (%p444) target = $region48
        $region47: #{cross_attention.1} parent=15 // pred_region
          %p447 = scmp.lt.s32.totalorder %s29, 1
          %s448 = scalar_select %p447, %s29, 1
          %s449 = smul.addr %s448, 2
          %s450 = smul.addr %s449, 4
          %s451 = scalar_lea.vmem %s7, %s450
        $region48: #{cross_attention.1} parent=15 // pred_fallthru
          _
        // Predicated region
        $region49: #{cross_attention.1} parent=15 // pred_check
          %p452 = pneg %p261
        $region50: #{cross_attention.1} parent=15 // pred_check_branch
          %454 = sbr.rel (%p452) target = $region52
        $region51: #{cross_attention.1} parent=15 // pred_region
          %p455 = scmp.lt.s32.totalorder %s28, 1
          %s456 = scalar_select %p455, %s28, 1
          %s457 = smul.addr %s456, 8
          %s458 = scalar_lea.vmem %s8, %s457
        $region52: #{cross_attention.1} parent=15 // pred_fallthru
          _
        // Predicated region
        $region53: #{cross_attention.1} parent=15 // pred_check
          %p459 = pneg %p287
        $region54: #{cross_attention.1} parent=15 // pred_check_branch
          %461 = sbr.rel (%p459) target = $region56
        $region55: #{cross_attention.1} parent=15 // pred_region
          %p462 = scmp.lt.s32.totalorder %s28, 1
          %s463 = scalar_select %p462, %s28, 1
          %s464 = smul.addr %s463, 8
          %s465 = scalar_lea.vmem %s9, %s464
        $region56: #{cross_attention.1} parent=15 // pred_fallthru
          _
        // Predicated region
        $region57: #{cross_attention.1} parent=15 // pred_check
          %p466 = pneg %p313
        $region58: #{cross_attention.1} parent=15 // pred_check_branch
          %468 = sbr.rel (%p466) target = $region60
        $region59: #{cross_attention.1} parent=15 // pred_region
          %p469 = scmp.lt.s32.totalorder %s28, 1
          %s470 = scalar_select %p469, %s28, 1
          %s471 = smul.addr %s470, 8
          %s472 = scalar_lea.vmem %s10, %s471
        $region60: #{cross_attention.1} parent=15 // pred_fallthru
          _
        // Predicated region
        $region61: #{cross_attention.1} parent=15 // pred_check
          %p473 = pneg %p339
        $region62: #{cross_attention.1} parent=15 // pred_check_branch
          %475 = sbr.rel (%p473) target = $region64
        $region63: #{cross_attention.1} parent=15 // pred_region
          %p476 = scmp.lt.s32.totalorder %s28, 1
          %s477 = scalar_select %p476, %s28, 1
          %s478 = smul.addr %s477, 8
          %s479 = scalar_lea.vmem %s11, %s478
        $region64: #{cross_attention.1} parent=15 // pred_fallthru
          _
      $region16: #{cross_attention.1} parent=5 // pred_fallthru
        _
      %p480 = scmp.le.s32.totalorder 1, %s21
      %p481 = scmp.lt.s32.totalorder %s21, 5
      %p482 = pnand %p480, %p481
      %p483 = pneg %p482
      // Predicated region
      $region65: #{cross_attention.1} parent=5 // pred_check
        _
      $region66: #{cross_attention.1} parent=5 // pred_check_branch
        %485 = sbr.rel (%p482) target = $region68
      $region67: #{cross_attention.1} parent=5 // pred_region
        %s486 = ssub.s32 %s21, 1
        %p487 = scmp.lt.s32.totalorder %s30, 1
        %s488 = scalar_select %p487, %s30, 1
        %s489 = smul.addr %s488, 8
        %s490 = scalar_lea.vmem %s0, %s489
        %p491 = pneg %p59
        %p492 = pneg %p56
        %p493 = scmp.lt.s32.totalorder %s30, 1
        %s494 = scalar_select %p493, %s30, 1
        %s495 = smul.addr %s494, 8
        %s496 = scalar_lea.vmem %s1, %s495
        %p497 = pneg %p85
        %p498 = pneg %p82
        %p499 = scmp.lt.s32.totalorder %s31, 1
        %s500 = scalar_select %p499, %s31, 1
        %s501 = smul.addr %s500, 4
        %s502 = smul.addr %s501, 4
        %s503 = scalar_lea.vmem %s2, %s502
        %p504 = pneg %p111
        %p505 = pneg %p108
        %p506 = scmp.lt.s32.totalorder %s31, 1
        %s507 = scalar_select %p506, %s31, 1
        %s508 = smul.addr %s507, 4
        %s509 = smul.addr %s508, 4
        %s510 = scalar_lea.vmem %s3, %s509
        %p511 = pneg %p137
        %p512 = pneg %p134
        %p513 = scmp.lt.s32.totalorder %s31, 1
        %s514 = scalar_select %p513, %s31, 1
        %s515 = smul.addr %s514, 4
        %s516 = smul.addr %s515, 4
        %s517 = scalar_lea.vmem %s4, %s516
        %p518 = pneg %p163
        %p519 = pneg %p160
        %p520 = scmp.lt.s32.totalorder %s31, 1
        %s521 = scalar_select %p520, %s31, 1
        %s522 = smul.addr %s521, 4
        %s523 = smul.addr %s522, 4
        %s524 = scalar_lea.vmem %s5, %s523
        %p525 = pneg %p189
        %p526 = pneg %p186
        %p527 = scmp.lt.s32.totalorder %s31, 1
        %s528 = scalar_select %p527, %s31, 1
        %s529 = smul.addr %s528, 4
        %s530 = smul.addr %s529, 4
        %s531 = scalar_lea.vmem %s6, %s530
        %p532 = pneg %p215
        %p533 = pneg %p212
        %p534 = scmp.lt.s32.totalorder %s31, 1
        %s535 = scalar_select %p534, %s31, 1
        %s536 = smul.addr %s535, 2
        %s537 = smul.addr %s536, 4
        %s538 = scalar_lea.vmem %s7, %s537
        %p539 = pneg %p241
        %p540 = pneg %p238
        %p541 = scmp.lt.s32.totalorder %s30, 1
        %s542 = scalar_select %p541, %s30, 1
        %s543 = smul.addr %s542, 8
        %s544 = scalar_lea.vmem %s8, %s543
        %p545 = pneg %p267
        %p546 = pneg %p264
        %p547 = scmp.lt.s32.totalorder %s30, 1
        %s548 = scalar_select %p547, %s30, 1
        %s549 = smul.addr %s548, 8
        %s550 = scalar_lea.vmem %s9, %s549
        %p551 = pneg %p293
        %p552 = pneg %p290
        %p553 = scmp.lt.s32.totalorder %s30, 1
        %s554 = scalar_select %p553, %s30, 1
        %s555 = smul.addr %s554, 8
        %s556 = scalar_lea.vmem %s10, %s555
        %p557 = pneg %p319
        %p558 = pneg %p316
        %p559 = scmp.lt.s32.totalorder %s30, 1
        %s560 = scalar_select %p559, %s30, 1
        %s561 = smul.addr %s560, 8
        %s562 = scalar_lea.vmem %s11, %s561
        %p563 = pneg %p345
        %p564 = pneg %p342
        %p565 = pneg %p371
        %p566 = pneg %p368
        %s567 = sand.u32 %s358, 1
        %s568 = scalar_lea.sflag [#allocation4], %s567
        %s569 = sand.u32 %s358, 1
        %s570 = smul.addr %s569, 8
        %s571 = scalar_lea.vmem [#allocation3], %s570
        %p572 = scmp.lt.s32.totalorder %s30, 1
        %s573 = scalar_select %p572, %s30, 1
        %s574 = smul.addr %s573, 8
        %s575 = scalar_lea.vmem %s0, %s574
        %p576 = scmp.lt.s32.totalorder %s30, 1
        %s577 = scalar_select %p576, %s30, 1
        %s578 = smul.addr %s577, 8
        %s579 = scalar_lea.vmem %s1, %s578
        %p580 = scmp.lt.s32.totalorder %s31, 1
        %s581 = scalar_select %p580, %s31, 1
        %s582 = smul.addr %s581, 4
        %s583 = smul.addr %s582, 4
        %s584 = scalar_lea.vmem %s2, %s583
        %p585 = scmp.lt.s32.totalorder %s31, 1
        %s586 = scalar_select %p585, %s31, 1
        %s587 = smul.addr %s586, 4
        %s588 = smul.addr %s587, 4
        %s589 = scalar_lea.vmem %s3, %s588
        %p590 = scmp.lt.s32.totalorder %s31, 1
        %s591 = scalar_select %p590, %s31, 1
        %s592 = smul.addr %s591, 4
        %s593 = smul.addr %s592, 4
        %s594 = scalar_lea.vmem %s4, %s593
        %p595 = scmp.lt.s32.totalorder %s31, 1
        %s596 = scalar_select %p595, %s31, 1
        %s597 = smul.addr %s596, 4
        %s598 = smul.addr %s597, 4
        %s599 = scalar_lea.vmem %s5, %s598
        %p600 = scmp.lt.s32.totalorder %s31, 1
        %s601 = scalar_select %p600, %s31, 1
        %s602 = smul.addr %s601, 4
        %s603 = smul.addr %s602, 4
        %s604 = scalar_lea.vmem %s6, %s603
        %p605 = scmp.lt.s32.totalorder %s31, 1
        %s606 = scalar_select %p605, %s31, 1
        %s607 = smul.addr %s606, 2
        %s608 = smul.addr %s607, 4
        %s609 = scalar_lea.vmem %s7, %s608
        %p610 = scmp.lt.s32.totalorder %s30, 1
        %s611 = scalar_select %p610, %s30, 1
        %s612 = smul.addr %s611, 8
        %s613 = scalar_lea.vmem %s8, %s612
        %p614 = scmp.lt.s32.totalorder %s30, 1
        %s615 = scalar_select %p614, %s30, 1
        %s616 = smul.addr %s615, 8
        %s617 = scalar_lea.vmem %s9, %s616
        %p618 = scmp.lt.s32.totalorder %s30, 1
        %s619 = scalar_select %p618, %s30, 1
        %s620 = smul.addr %s619, 8
        %s621 = scalar_lea.vmem %s10, %s620
        %p622 = scmp.lt.s32.totalorder %s30, 1
        %s623 = scalar_select %p622, %s30, 1
        %s624 = smul.addr %s623, 8
        %s625 = scalar_lea.vmem %s11, %s624
        %p627 = scmp.eq.s32.totalorder %s31, 0
        // Predicated region
        $region69: #{cross_attention.1} parent=67 // pred_check
          %p628 = pneg %p627
        $region70: #{cross_attention.1} parent=67 // pred_check_branch
          %630 = sbr.rel (%p628) target = $region72
        $region71: #{cross_attention.1} parent=67 // pred_region
          %vm631 = vcmask 261120
          %632 = vst.msk [vmem:[#allocation2] sm:$0xff] %vm631, 0.0
        $region72: #{cross_attention.1} parent=67 // pred_fallthru
          _
        %v633 = vld [vmem:[%s575] sm:$0xff]
        %v634 = vpack.c.bf16 %v633, %v633
        %v635 = vld [vmem:[%s579] sm:$0xff]
        %v636 = vpack.c.bf16 %v635, %v635
        %v637 = vld [vmem:[%s584] sm:$0xf]
        %v638 = vld [vmem:[%s584 + $0x4] sm:$0xf]
        %v639 = vld [vmem:[%s584 + $0x8] sm:$0xf]
        %v640 = vld [vmem:[%s584 + $0xc] sm:$0xf]
        %v645 = vunpack.c.l.b16 %v637
        %v646 = vunpack.c.l.b16 %v638
        %v647 = vunpack.c.l.b16 %v639
        %v648 = vunpack.c.l.b16 %v640
        %v649 = vpack.c.b16 %v646, %v645
        %v650 = vpack.c.b16 %v648, %v647
        %vm653 = vcmask 261120
        %v655 = vsel %vm653, %v634, 0
        %657 = vmatpush.bf16.msra.mxu0 0
        %658 = vmatpush.bf16.msra.mxu0 0
        %659 = vmatpush.bf16.msra.mxu0 0
        %660 = vmatpush.bf16.msra.mxu0 0
        %661 = vmatpush.bf16.msra.mxu0 0
        %662 = vmatpush.bf16.msra.mxu0 0
        %663 = vmatpush.bf16.msra.mxu0 %v650
        %664 = vmatpush.bf16.msra.mxu0 %v649
        %665 = vmatmul.bf16.gmra.mxu0 %v655
        %v666 = vpop.f32.mrf.mxu0
        %v667 = vadd.f32 0.0, %v666
        %v668 = vpop.f32.mrf.mxu0
        %669 = vdwg.mxu0
        %v670 = vld [vmem:[%s613] sm:$0xff]
        %v671 = vmul.f32 %v667, %v670
        %v672 = vld [vmem:[%s589] sm:$0xf]
        %v673 = vld [vmem:[%s589 + $0x4] sm:$0xf]
        %v674 = vld [vmem:[%s589 + $0x8] sm:$0xf]
        %v675 = vld [vmem:[%s589 + $0xc] sm:$0xf]
        %v680 = vunpack.c.l.b16 %v672
        %v681 = vunpack.c.l.b16 %v673
        %v682 = vunpack.c.l.b16 %v674
        %v683 = vunpack.c.l.b16 %v675
        %v684 = vpack.c.b16 %v681, %v680
        %v685 = vpack.c.b16 %v683, %v682
        %688 = vmatpush.bf16.msra.mxu0 0
        %689 = vmatpush.bf16.msra.mxu0 0
        %690 = vmatpush.bf16.msra.mxu0 0
        %691 = vmatpush.bf16.msra.mxu0 0
        %692 = vmatpush.bf16.msra.mxu0 0
        %693 = vmatpush.bf16.msra.mxu0 0
        %694 = vmatpush.bf16.msra.mxu0 %v685
        %695 = vmatpush.bf16.msra.mxu0 %v684
        %696 = vmatmul.bf16.gmra.mxu0 %v655
        %v697 = vpop.f32.mrf.mxu0
        %v698 = vadd.f32 0.0, %v697
        %v699 = vpop.f32.mrf.mxu0
        %700 = vdwg.mxu0
        %v701 = vld [vmem:[%s617] sm:$0xff]
        %v702 = vmul.f32 %v698, %v701
        %v703 = vadd.f32 %v671, %v702
        %v704 = vld [vmem:[%s594] sm:$0xf]
        %v705 = vld [vmem:[%s594 + $0x4] sm:$0xf]
        %v706 = vld [vmem:[%s594 + $0x8] sm:$0xf]
        %v707 = vld [vmem:[%s594 + $0xc] sm:$0xf]
        %v712 = vunpack.c.l.b16 %v704
        %v713 = vunpack.c.l.b16 %v705
        %v714 = vunpack.c.l.b16 %v706
        %v715 = vunpack.c.l.b16 %v707
        %v716 = vpack.c.b16 %v713, %v712
        %v717 = vpack.c.b16 %v715, %v714
        %v721 = vsel %vm653, %v636, 0
        %723 = vmatpush.bf16.msra.mxu0 0
        %724 = vmatpush.bf16.msra.mxu0 0
        %725 = vmatpush.bf16.msra.mxu0 0
        %726 = vmatpush.bf16.msra.mxu0 0
        %727 = vmatpush.bf16.msra.mxu0 0
        %728 = vmatpush.bf16.msra.mxu0 0
        %729 = vmatpush.bf16.msra.mxu0 %v717
        %730 = vmatpush.bf16.msra.mxu0 %v716
        %731 = vmatmul.bf16.gmra.mxu0 %v721
        %v732 = vpop.f32.mrf.mxu0
        %v733 = vadd.f32 0.0, %v732
        %v734 = vpop.f32.mrf.mxu0
        %735 = vdwg.mxu0
        %v736 = vld [vmem:[%s621] sm:$0xff]
        %v737 = vmul.f32 %v733, %v736
        %v738 = vld [vmem:[%s599] sm:$0xf]
        %v739 = vld [vmem:[%s599 + $0x4] sm:$0xf]
        %v740 = vld [vmem:[%s599 + $0x8] sm:$0xf]
        %v741 = vld [vmem:[%s599 + $0xc] sm:$0xf]
        %v746 = vunpack.c.l.b16 %v738
        %v747 = vunpack.c.l.b16 %v739
        %v748 = vunpack.c.l.b16 %v740
        %v749 = vunpack.c.l.b16 %v741
        %v750 = vpack.c.b16 %v747, %v746
        %v751 = vpack.c.b16 %v749, %v748
        %754 = vmatpush.bf16.msra.mxu0 0
        %755 = vmatpush.bf16.msra.mxu0 0
        %756 = vmatpush.bf16.msra.mxu0 0
        %757 = vmatpush.bf16.msra.mxu0 0
        %758 = vmatpush.bf16.msra.mxu0 0
        %759 = vmatpush.bf16.msra.mxu0 0
        %760 = vmatpush.bf16.msra.mxu0 %v751
        %761 = vmatpush.bf16.msra.mxu0 %v750
        %762 = vmatmul.bf16.gmra.mxu0 %v721
        %v763 = vpop.f32.mrf.mxu0
        %v764 = vadd.f32 0.0, %v763
        %v765 = vpop.f32.mrf.mxu0
        %766 = vdwg.mxu0
        %v767 = vld [vmem:[%s625] sm:$0xff]
        %v768 = vmul.f32 %v764, %v767
        %v769 = vadd.f32 %v737, %v768
        %v770 = vld [vmem:[%s604] sm:$0xf]
        %v771 = vld [vmem:[%s604 + $0x4] sm:$0xf]
        %v772 = vld [vmem:[%s604 + $0x8] sm:$0xf]
        %v773 = vld [vmem:[%s604 + $0xc] sm:$0xf]
        %v778 = vunpack.c.l.b16 %v770
        %v779 = vunpack.c.l.b16 %v771
        %v780 = vunpack.c.l.b16 %v772
        %v781 = vunpack.c.l.b16 %v773
        %v782 = vpack.c.b16 %v779, %v778
        %v783 = vpack.c.b16 %v781, %v780
        %786 = vmatpush.bf16.msra.mxu0 0
        %787 = vmatpush.bf16.msra.mxu0 0
        %788 = vmatpush.bf16.msra.mxu0 0
        %789 = vmatpush.bf16.msra.mxu0 0
        %790 = vmatpush.bf16.msra.mxu0 0
        %791 = vmatpush.bf16.msra.mxu0 0
        %792 = vmatpush.bf16.msra.mxu0 %v783
        %793 = vmatpush.bf16.msra.mxu0 %v782
        %794 = vmatmul.bf16.gmra.mxu0 %v721
        %v795 = vpop.f32.mrf.mxu0
        %v796 = vadd.f32 0.0, %v795
        %v797 = vpop.f32.mrf.mxu0
        %798 = vdwg.mxu0
        %v799 = vpack.c.bf16 %v703, %v703
        %v800 = vpack.c.bf16 %v769, %v769
        %vm801 = vcmask 130048
        %v803 = vsel %vm801, %v799, 0
        %v806 = vsel %vm801, %v800, 0
        %808 = vmatpush.bf16.xpose.msra.mxu0 0
        %809 = vmatpush.bf16.xpose.msra.mxu0 0
        %810 = vmatpush.bf16.xpose.msra.mxu0 0
        %811 = vmatpush.bf16.xpose.msra.mxu0 0
        %812 = vmatpush.bf16.xpose.msra.mxu0 0
        %813 = vmatpush.bf16.xpose.msra.mxu0 0
        %814 = vmatpush.bf16.xpose.msra.mxu0 0
        %815 = vmatpush.bf16.xpose.msra.mxu0 %v806
        %816 = vmatmul.bf16.gmra.mxu0 %v803
        %v817 = vpop.f32.mrf.mxu0
        %v818 = vadd.f32 0.0, %v817
        %v819 = vpop.f32.mrf.mxu0
        %820 = vdwg.mxu0
        %v821 = vmul.f32 %v818, 0.25
        %vm822 = vcmask 64512
        %v823 = vsel %vm822, %v821, -inf
        %824 = vmax.xlane.f32.xlu0 %v823
        %v825 = vpop.xlane.xlu0 %824
        %v826 = vsub.f32 %v821, %v825
        %v827 = vmul.f32 %v826, 1.442695
        %v828 = vpow.pop %v827
        %v829 = vsel %vm822, %v828, 0.0
        %830 = vadd.xlane.f32.xlu0 %v829
        %v831 = vpop.xlane.xlu0 %830
        %v832 = vrcp.pop %v831
        %v833 = vpack.c.bf16 %v828, %v828
        %v834 = vpack.c.bf16 %v796, %v796
        %v836 = vsel %vm822, %v833, 0
        %vm838 = vcmask 1043456
        %v840 = vsel %vm838, %v834, 0
        %842 = vmatpush.bf16.msra.mxu0 0
        %843 = vmatpush.bf16.msra.mxu0 0
        %844 = vmatpush.bf16.msra.mxu0 0
        %845 = vmatpush.bf16.msra.mxu0 0
        %846 = vmatpush.bf16.msra.mxu0 0
        %847 = vmatpush.bf16.msra.mxu0 0
        %848 = vmatpush.bf16.msra.mxu0 0
        %849 = vmatpush.bf16.msra.mxu0 %v840
        %850 = vmatmul.bf16.gmra.mxu0 %v836
        %v851 = vpop.f32.mrf.mxu0
        %v852 = vadd.f32 0.0, %v851
        %v853 = vpop.f32.mrf.mxu0
        %854 = vdwg.mxu0
        %v855 = vmul.f32 %v852, %v832
        %v856 = vld [vmem:[#allocation2] sm:$0xff]
        %v857 = vpack.c.bf16 %v855, %v855
        %v858 = vld [vmem:[%s609] sm:$0xf]
        %v859 = vld [vmem:[%s609 + $0x4] sm:$0xf]
        %v862 = vunpack.c.l.b16 %v858
        %v863 = vunpack.c.l.b16 %v859
        %v864 = vpack.c.b16 %v863, %v862
        %v867 = vsel %vm801, %v857, 0
        %869 = vmatpush.bf16.msra.mxu0 0
        %870 = vmatpush.bf16.msra.mxu0 0
        %871 = vmatpush.bf16.msra.mxu0 0
        %872 = vmatpush.bf16.msra.mxu0 0
        %873 = vmatpush.bf16.msra.mxu0 0
        %874 = vmatpush.bf16.msra.mxu0 0
        %875 = vmatpush.bf16.msra.mxu0 0
        %876 = vmatpush.bf16.msra.mxu0 %v864
        %877 = vmatmul.bf16.gmra.mxu0 %v867
        %v878 = vpop.f32.mrf.mxu0
        %v879 = vadd.f32 0.0, %v878
        %v880 = vpop.f32.mrf.mxu0
        %881 = vdwg.mxu0
        %v882 = vadd.f32 %v856, %v879
        %883 = vst.msk [vmem:[#allocation2] sm:$0xff] %vm653, %v882
        %p884 = scmp.eq.s32.totalorder %s31, 1
        // Predicated region
        $region73: #{cross_attention.1} parent=67 // pred_check
          %p885 = pneg %p884
        $region74: #{cross_attention.1} parent=67 // pred_check_branch
          %887 = sbr.rel (%p885) target = $region76
        $region75: #{cross_attention.1} parent=67 // pred_region
          %v888 = vld [vmem:[#allocation2] sm:$0xff]
          %889 = vst.msk [vmem:[%s571] sm:$0xff] %vm653, %v888
        $region76: #{cross_attention.1} parent=67 // pred_fallthru
          _
        %s890 = sand.u32 %s358, 1
        %s891 = scalar_lea.sflag [#allocation4], %s890
        %s892 = sand.u32 %s358, 1
        %s893 = smul.addr %s892, 8
        %s894 = scalar_lea.vmem [#allocation3], %s893
        // Predicated region
        $region77: #{cross_attention.1} parent=67 // pred_check
          %p895 = pneg %p368
        $region78: #{cross_attention.1} parent=67 // pred_check_branch
          %897 = sbr.rel (%p895) target = $region80
        $region79: #{cross_attention.1} parent=67 // pred_region
          %899 = vsyncadd %s891, 0
          %s900 = smul.addr %s30, 8
          %s901 = scalar_lea.hbm %s12, %s900
          %s903 = sshll.u32 %s894, 4
          %s904 = int_to_ptr.vmem [resolvable:$true] %s903
          %s905 = sshll.u32 %s901, 4
          %s906 = int_to_ptr.hbm [resolvable:$true] %s905
          %908 = dma.vmem_to_hbm [thread:$0]  %s904, 128, %s906, %s891
        $region80: #{cross_attention.1} parent=67 // pred_fallthru
          _
      $region68: #{cross_attention.1} parent=5 // pred_fallthru
        _
      %p909 = scmp.le.s32.totalorder 2, %s21
      // Predicated region
      $region81: #{cross_attention.1} parent=5 // pred_check
        %p910 = pneg %p909
      $region82: #{cross_attention.1} parent=5 // pred_check_branch
        %912 = sbr.rel (%p910) target = $region84
      $region83: #{cross_attention.1} parent=5 // pred_region
        %s913 = ssub.s32 %s21, 2
        // Predicated region
        $region85: #{cross_attention.1} parent=83 // pred_check
          %p914 = pneg %p374
        $region86: #{cross_attention.1} parent=83 // pred_check_branch
          %916 = sbr.rel (%p914) target = $region88
        $region87: #{cross_attention.1} parent=83 // pred_region
          %s917 = sand.u32 %s359, 1
          %s918 = scalar_lea.sflag [#allocation4], %s917
          %s919 = sand.u32 %s359, 1
          %s920 = smul.addr %s919, 8
          %s921 = scalar_lea.vmem [#allocation3], %s920
          %923 = dma.done %s918, 128
        $region88: #{cross_attention.1} parent=83 // pred_fallthru
          _
      $region84: #{cross_attention.1} parent=5 // pred_fallthru
        _
    $region6: #{cross_attention.1} parent=1 // loop_footer
      %s25 = sadd.s32 1, %s21
    $region7: #{cross_attention.1} parent=1 // loop_footer_branch
      %20 = sbr.rel target = $region3
    $region8: #{cross_attention.1} parent=1 // loop_exit
      _
    %924 = vsyncpa [#allocation4], 1
    %s925 = scalar_lea.sflag [#allocation4], 1
    %926 = vsyncpa %s925, 1

</llo_original>
